<compile_context>
chip_gen: v7x
topology: tpu7x:2x2x1
jax: 0.10.0
libtpu: 0.0.40
codegen_flags: <defaults>
</compile_context>

<pallas_src>
import jax
import jax.numpy as jnp
from jax.experimental import pallas as pl
from jax.experimental.pallas import tpu as pltpu

LANES = 1024          # 8 vregs wide per sublane row -> lane-dense, unmasked stores
TILE_ROWS = 1024      # (1024, 1024) f32 = 4 MiB per block


def _round_up(a, m):
    return (a + m - 1) // m * m


def logreg_kernel(w_ref, b_ref, x_ref, o_ref):
    # w_ref / b_ref: (1, 1) f32 tiles in VMEM; x_ref / o_ref: (tr, LANES) f32 tiles.
    w = w_ref[0, 0]
    b = b_ref[0, 0]
    z = x_ref[...] * w + b                       # Linear(1, 1): x*w + b
    # sigmoid(z) = 0.5 * tanh(0.5 * z) + 0.5 : exact, single EUP transcendental,
    # no exp overflow for very negative z.
    o_ref[...] = 0.5 * jnp.tanh(0.5 * z) + 0.5


def logistic_regression_forward(x, w, b, *, tile_rows=TILE_ROWS, lanes=LANES):
    """x: (N, 1) f32, w: (1, 1) f32, b: (1,) f32 -> (N, 1) f32 = sigmoid(x*w + b)."""
    n, f = x.shape
    assert f == 1
    total = n * f

    w2 = jnp.asarray(w, jnp.float32).reshape(1, 1)
    b2 = jnp.asarray(b, jnp.float32).reshape(1, 1)

    flat = x.astype(jnp.float32).reshape(-1)

    rows = pl.cdiv(total, lanes)                 # rows of the lane-dense view
    rows8 = _round_up(max(rows, 1), 8)           # sublane-aligned row count
    tr = min(tile_rows, rows8)

    # v7x megacore: a 1-step grid keeps one TensorCore idle.  Split mid-size
    # batches into two row tiles, unless that would introduce padding that the
    # no-pad fast path otherwise avoids.
    if rows8 == tr and rows8 >= 16:
        half = _round_up(pl.cdiv(rows8, 2), 8)
        if 2 * half == rows8 or rows8 * lanes != total:
            tr = half

    padded_rows = _round_up(rows8, tr)
    pad = padded_rows * lanes - total

    if pad:
        # TODO(synk): for very large ragged N the pad (and the slice below) each add
        # one extra HBM pass; a manual-DMA (pl.ANY) ragged-tail path would remove them.
        flat = jnp.pad(flat, (0, pad))
    x2d = flat.reshape(padded_rows, lanes)       # free (metadata-only) when pad == 0

    grid = (padded_rows // tr,)
    y2d = pl.pallas_call(
        logreg_kernel,
        out_shape=jax.ShapeDtypeStruct((padded_rows, lanes), jnp.float32),
        grid=grid,
        in_specs=[
            pl.BlockSpec((1, 1), lambda i: (0, 0)),        # w (1,1) scalar tile
            pl.BlockSpec((1, 1), lambda i: (0, 0)),        # b (1,1) scalar tile
            pl.BlockSpec((tr, lanes), lambda i: (i, 0)),   # x row tile
        ],
        out_specs=pl.BlockSpec((tr, lanes), lambda i: (i, 0)),
        compiler_params=pltpu.CompilerParams(
            dimension_semantics=("parallel",),        # megacore sharding on v7x
            vmem_limit_bytes=32 * 1024 * 1024,        # 2x4MiB in + 2x4MiB out + slack
        ),
    )(w2, b2, x2d)

    out = y2d.reshape(-1)                        # free reshape
    if pad:
        out = out[:total]                        # drop sigmoid(0)=0.5 padding rows
    return out.reshape(n, 1)


if __name__ == "__main__":
    key = jax.random.PRNGKey(0)
    kx, kw, kb, kx2 = jax.random.split(key, 4)

    # Deterministic synthetic parameters, same shapes as nn.Linear(1, 1).
    w = jax.random.uniform(kw, (1, 1), jnp.float32, minval=-1.0, maxval=1.0)
    b = jax.random.uniform(kb, (1,), jnp.float32, minval=-1.0, maxval=1.0)

    # Small batch of scalar features (typical logistic-regression input).
    x = jax.random.normal(kx, (8, 1), jnp.float32)
    y = jax.block_until_ready(logistic_regression_forward(x, w, b))
    y_ref = jax.nn.sigmoid(x @ w.T + b)
    assert y.shape == (8, 1)
    assert jnp.allclose(y, y_ref, atol=2e-3), "mismatch vs reference (small batch)"

    # Second, non-multiple-of-lane batch to exercise the pad/slice path.
    x2 = jax.random.normal(kx2, (3000, 1), jnp.float32)
    y2 = jax.block_until_ready(logistic_regression_forward(x2, w, b))
    y2_ref = jax.nn.sigmoid(x2 @ w.T + b)
    assert y2.shape == (3000, 1)
    assert jnp.allclose(y2, y2_ref, atol=2e-3), "mismatch vs reference (padded batch)"

    print("KERNEL_OK")
</pallas_src>

<mosaic_0001>
module attributes {stable_mosaic.version = 11 : i64} {
  func.func @logreg_kernel(%arg0: i32, %arg1: memref<1x1xf32, #tpu.memory_space<vmem>>, %arg2: memref<1x1xf32, #tpu.memory_space<vmem>>, %arg3: memref<8x1024xf32, #tpu.memory_space<vmem>>, %arg4: memref<8x1024xf32, #tpu.memory_space<vmem>>) attributes {dimension_semantics = [#tpu.dimension_semantics<parallel>], iteration_bounds = array<i64: 1>, scalar_prefetch = 0 : i64, scratch_operands = 0 : i64, tpu.core_type = #tpu.core_type<tc>, window_params = [{pipeline_mode = #tpu.pipeline_mode<synchronous>, transform_indices = @transform_0, window_bounds = array<i64: 1, 1>}, {pipeline_mode = #tpu.pipeline_mode<synchronous>, transform_indices = @transform_1, window_bounds = array<i64: 1, 1>}, {transform_indices = @transform_2, window_bounds = array<i64: 8, 1024>}, {transform_indices = @transform_3, window_bounds = array<i64: 8, 1024>}]} {
    %c0 = arith.constant 0 : index
    %c0_0 = arith.constant 0 : index
    %0 = vector.load %arg1[%c0, %c0_0] : memref<1x1xf32, #tpu.memory_space<vmem>>, vector<1x1xf32>
    %1 = vector.extract %0[0, 0] : f32 from vector<1x1xf32>
    %c0_1 = arith.constant 0 : index
    %c0_2 = arith.constant 0 : index
    %2 = vector.load %arg2[%c0_1, %c0_2] : memref<1x1xf32, #tpu.memory_space<vmem>>, vector<1x1xf32>
    %3 = vector.extract %2[0, 0] : f32 from vector<1x1xf32>
    %c0_3 = arith.constant 0 : index
    %c0_4 = arith.constant 0 : index
    %4 = vector.load %arg3[%c0_3, %c0_4] : memref<8x1024xf32, #tpu.memory_space<vmem>>, vector<8x1024xf32>
    %5 = vector.broadcast %1 : f32 to vector<8x1024xf32>
    %6 = arith.mulf %4, %5 : vector<8x1024xf32>
    %7 = vector.broadcast %3 : f32 to vector<8x1024xf32>
    %8 = arith.addf %6, %7 : vector<8x1024xf32>
    %cst = arith.constant 5.000000e-01 : f32
    %9 = vector.broadcast %cst : f32 to vector<8x1024xf32>
    %10 = arith.mulf %9, %8 : vector<8x1024xf32>
    %11 = math.tanh %10 : vector<8x1024xf32>
    %cst_5 = arith.constant 5.000000e-01 : f32
    %12 = vector.broadcast %cst_5 : f32 to vector<8x1024xf32>
    %13 = arith.mulf %12, %11 : vector<8x1024xf32>
    %cst_6 = arith.constant 5.000000e-01 : f32
    %14 = vector.broadcast %cst_6 : f32 to vector<8x1024xf32>
    %15 = arith.addf %13, %14 : vector<8x1024xf32>
    %c0_7 = arith.constant 0 : index
    %c0_8 = arith.constant 0 : index
    %16 = vector.load %arg4[%c0_7, %c0_8] : memref<8x1024xf32, #tpu.memory_space<vmem>>, vector<8x1024xf32>
    tpu.vector_store %arg4[%c0_7, %c0_8], %15 {strides = array<i32>} : memref<8x1024xf32, #tpu.memory_space<vmem>>, vector<8x1024xf32>,
    return
  }
  func.func @transform_0(%arg0: i32) -> (i32, i32) {
    %c0_i32 = arith.constant 0 : i32
    %c0_i32_0 = arith.constant 0 : i32
    %c0_i32_1 = arith.constant 0 : i32
    return %c0_i32, %c0_i32_0 : i32, i32
  }
  func.func @transform_1(%arg0: i32) -> (i32, i32) {
    %c0_i32 = arith.constant 0 : i32
    %c0_i32_0 = arith.constant 0 : i32
    %c0_i32_1 = arith.constant 0 : i32
    return %c0_i32, %c0_i32_0 : i32, i32
  }
  func.func @transform_2(%arg0: i32) -> (i32, i32) {
    %c0_i32 = arith.constant 0 : i32
    %c0_i32_0 = arith.constant 0 : i32
    return %arg0, %c0_i32 : i32, i32
  }
  func.func @transform_3(%arg0: i32) -> (i32, i32) {
    %c0_i32 = arith.constant 0 : i32
    %c0_i32_0 = arith.constant 0 : i32
    return %arg0, %c0_i32 : i32, i32
  }
}

</mosaic_0001>

<llo_original>
// kernel: tpu_custom_call.1
$region0: #{tpu_custom_call.1}
  #allocation0 [shape = 'u32[]', space=smem, size = 0x4, offset = 0x4, fixed_abs, tag = 'smem constant byte address 0x4 - core index']
  #allocation1 [shape = 'u32[144,128]{1,0:T(1,128)}', space=vmem, size = 0x12000, scoped, tag = 'internal scratch']
  #allocation2 [shape = 'f32[1,1]{1,0:T(1,128)S(1)}', space=vmem, size = 0x200, scoped, tag = 'scoped memory for tpu_custom_call.1']
  #allocation3 [shape = 'f32[1,1]{1,0:T(1,128)S(1)}', space=vmem, size = 0x200, scoped, tag = 'scoped memory for tpu_custom_call.1']
  %s0 = inlined_call_operand.<no memory space> [shape: f32[1,1], index: 0, kind: input, shape index: {}]
  %s1 = inlined_call_operand.<no memory space> [shape: f32[1,1], index: 1, kind: input, shape index: {}]
  %s2 = inlined_call_operand.hbm [shape: f32[8,1024], index: 2, kind: input, shape index: {}]
  %s3 = inlined_call_operand.hbm [shape: f32[8,1024], index: 3, kind: output, shape index: {}]
  %s4 = sld [smem:[#allocation0]]
  $region26: #{tpu_custom_call.1} parent=0
    _
  %s6 = ssub.s32 1, %s4
  %s7 = scalar_select 0, %s6, %s4
  %v8 = vstv %s0
  %9 = vst [vmem:[#allocation2] sm:$0x1] %v8
  %v10 = vstv %s1
  %11 = vst [vmem:[#allocation3] sm:$0x1] %v10
  $region1: #{tpu_custom_call.1} parent=0
    #allocation4 [shape = 'u8[32768]{0}', space=vmem, size = 0x8000, scoped, tag = 'input window, operand 2, single buffered']
    #allocation5 [shape = 's32[1]{0}', space=sflag, size = 0x4, scoped, tag = 'scoped memory for tpu_custom_call.1']
    #allocation6 [shape = 's32[1]{0}', space=sflag, size = 0x4, scoped, tag = 'scoped memory for tpu_custom_call.1']
    #allocation7 [shape = 'u8[32768]{0}', space=vmem, size = 0x8000, scoped, tag = 'output window, operand 0, single buffered']
    %12 = vsyncpa [#allocation5], 0
    %13 = vsyncpa [#allocation6], 0
    // Predicated region
    $region2: #{tpu_custom_call.1} parent=1 // pred_check
      _
    $region3: #{tpu_custom_call.1} parent=1 // pred_check_branch
      %15 = sbr.rel (0) target = $region5
    $region4: #{tpu_custom_call.1} parent=1 // pred_region
      _
    $region5: #{tpu_custom_call.1} parent=1 // pred_fallthru
      _
    // Predicated region
    $region6: #{tpu_custom_call.1} parent=1 // pred_check
      _
    $region7: #{tpu_custom_call.1} parent=1 // pred_check_branch
      %17 = sbr.rel (0) target = $region9
    $region8: #{tpu_custom_call.1} parent=1 // pred_region
      _
    $region9: #{tpu_custom_call.1} parent=1 // pred_fallthru
      _
    // Predicated region
    $region10: #{tpu_custom_call.1} parent=1 // pred_check
      _
    $region11: #{tpu_custom_call.1} parent=1 // pred_check_branch
      %19 = sbr.rel (0) target = $region13
    $region12: #{tpu_custom_call.1} parent=1 // pred_region
      %s21 = ssub.s32 1024, 1024
      %22 = vsyncadd [#allocation5], %s21
      %s24 = sshll.u32 [#allocation4], 4
      %s25 = int_to_ptr.vmem [resolvable:$true] %s24
      %27 = dma.hbm_to_vmem [thread:$0]  %s2, 1024, %s25, [#allocation5]
    $region13: #{tpu_custom_call.1} parent=1 // pred_fallthru
      _
    // Predicated region
    $region14: #{tpu_custom_call.1} parent=1 // pred_check
      _
    $region15: #{tpu_custom_call.1} parent=1 // pred_check_branch
      %29 = sbr.rel (0) target = $region17
    $region16: #{tpu_custom_call.1} parent=1 // pred_region
      %30 = dma.done [#allocation5], 1024
    $region17: #{tpu_custom_call.1} parent=1 // pred_fallthru
      _
    %v31 = vld [vmem:[#allocation2] sm:$0x1]
    %s32 = vtos %v31
    %v33 = vld [vmem:[#allocation3] sm:$0x1]
    %s34 = vtos %v33
    %v35 = vld [vmem:[#allocation4] sm:$0xff]
    %v36 = vld [vmem:[#allocation4 + $0x8] sm:$0xff]
    %v37 = vld [vmem:[#allocation4 + $0x10] sm:$0xff]
    %v38 = vld [vmem:[#allocation4 + $0x18] sm:$0xff]
    %v39 = vld [vmem:[#allocation4 + $0x20] sm:$0xff]
    %v40 = vld [vmem:[#allocation4 + $0x28] sm:$0xff]
    %v41 = vld [vmem:[#allocation4 + $0x30] sm:$0xff]
    %v42 = vld [vmem:[#allocation4 + $0x38] sm:$0xff]
    %v43 = vstv %s32
    %v44 = vmul.f32 %v35, %v43
    %v45 = vmul.f32 %v36, %v43
    %v46 = vmul.f32 %v37, %v43
    %v47 = vmul.f32 %v38, %v43
    %v48 = vmul.f32 %v39, %v43
    %v49 = vmul.f32 %v40, %v43
    %v50 = vmul.f32 %v41, %v43
    %v51 = vmul.f32 %v42, %v43
    %v52 = vstv %s34
    %v53 = vadd.f32 %v44, %v52
    %v54 = vadd.f32 %v45, %v52
    %v55 = vadd.f32 %v46, %v52
    %v56 = vadd.f32 %v47, %v52
    %v57 = vadd.f32 %v48, %v52
    %v58 = vadd.f32 %v49, %v52
    %v59 = vadd.f32 %v50, %v52
    %v60 = vadd.f32 %v51, %v52
    %v61 = vmul.f32 %v53, 0.5
    %v62 = vmul.f32 %v54, 0.5
    %v63 = vmul.f32 %v55, 0.5
    %v64 = vmul.f32 %v56, 0.5
    %v65 = vmul.f32 %v57, 0.5
    %v66 = vmul.f32 %v58, 0.5
    %v67 = vmul.f32 %v59, 0.5
    %v68 = vmul.f32 %v60, 0.5
    %v69 = vtanh.pop %v61
    %v70 = vtanh.pop %v62
    %v71 = vtanh.pop %v63
    %v72 = vtanh.pop %v64
    %v73 = vtanh.pop %v65
    %v74 = vtanh.pop %v66
    %v75 = vtanh.pop %v67
    %v76 = vtanh.pop %v68
    %v77 = vmul.f32 %v69, 0.5
    %v78 = vmul.f32 %v70, 0.5
    %v79 = vmul.f32 %v71, 0.5
    %v80 = vmul.f32 %v72, 0.5
    %v81 = vmul.f32 %v73, 0.5
    %v82 = vmul.f32 %v74, 0.5
    %v83 = vmul.f32 %v75, 0.5
    %v84 = vmul.f32 %v76, 0.5
    %v85 = vadd.f32 %v77, 0.5
    %v86 = vadd.f32 %v78, 0.5
    %v87 = vadd.f32 %v79, 0.5
    %v88 = vadd.f32 %v80, 0.5
    %v89 = vadd.f32 %v81, 0.5
    %v90 = vadd.f32 %v82, 0.5
    %v91 = vadd.f32 %v83, 0.5
    %v92 = vadd.f32 %v84, 0.5
    %93 = vst [vmem:[#allocation7] sm:$0xff] %v85
    %94 = vst [vmem:[#allocation7 + $0x8] sm:$0xff] %v86
    %95 = vst [vmem:[#allocation7 + $0x10] sm:$0xff] %v87
    %96 = vst [vmem:[#allocation7 + $0x18] sm:$0xff] %v88
    %97 = vst [vmem:[#allocation7 + $0x20] sm:$0xff] %v89
    %98 = vst [vmem:[#allocation7 + $0x28] sm:$0xff] %v90
    %99 = vst [vmem:[#allocation7 + $0x30] sm:$0xff] %v91
    %100 = vst [vmem:[#allocation7 + $0x38] sm:$0xff] %v92
    // Predicated region
    $region18: #{tpu_custom_call.1} parent=1 // pred_check
      _
    $region19: #{tpu_custom_call.1} parent=1 // pred_check_branch
      %102 = sbr.rel (0) target = $region21
    $region20: #{tpu_custom_call.1} parent=1 // pred_region
      %s104 = ssub.s32 1024, 1024
      %105 = vsyncadd [#allocation6], %s104
      %s107 = sshll.u32 [#allocation7], 4
      %s108 = int_to_ptr.vmem [resolvable:$true] %s107
      %110 = dma.vmem_to_hbm [thread:$0]  %s108, 1024, %s3, [#allocation6]
    $region21: #{tpu_custom_call.1} parent=1 // pred_fallthru
      _
    // Predicated region
    $region22: #{tpu_custom_call.1} parent=1 // pred_check
      _
    $region23: #{tpu_custom_call.1} parent=1 // pred_check_branch
      %112 = sbr.rel (0) target = $region25
    $region24: #{tpu_custom_call.1} parent=1 // pred_region
      %113 = dma.done [#allocation6], 1024
    $region25: #{tpu_custom_call.1} parent=1 // pred_fallthru
      _
    %114 = vsyncpa [#allocation5], 1
    %115 = vsyncpa [#allocation6], 1

</llo_original>
